<compile_context>
chip_gen: v7x
topology: tpu7x:2x2x1
jax: 0.10.0
libtpu: 0.0.40
codegen_flags: <defaults>
</compile_context>

<pallas_src>
import jax
import jax.numpy as jnp
from jax.experimental import pallas as pl
from jax.experimental.pallas import tpu as pltpu


def _hswish_kernel(x_ref, o_ref):
    x = x_ref[...]
    # relu6(x + 3) / 6  ->  clamp(x + 3, 0, 6) * (1/6)
    f = jnp.clip(x + 3.0, 0.0, 6.0) * (1.0 / 6.0)
    o_ref[...] = (x * f).astype(o_ref.dtype)


_MIB = 1024 * 1024
_LANE_CHOICES = (1024, 512, 256, 128)   # lane-dense last dim candidates


def _round_up(a: int, b: int) -> int:
    return ((a + b - 1) // b) * b


def _round_down(a: int, b: int) -> int:
    return (a // b) * b


def _target_block_bytes() -> int:
    """Generation-aware block target (bigger where HBM is faster)."""
    vmem = None
    try:
        vmem = int(getattr(pltpu.get_tpu_info(), "vmem_capacity_bytes", 0)) or None
    except Exception:
        vmem = None
    if vmem is not None and vmem <= 64 * _MIB:
        # v7x-class: 64 MiB VMEM, ~3.2 TB/s HBM. 6 MiB blocks -> 24 MiB
        # double-buffered in+out footprint, amortizes ~0.35 us per-step overhead.
        return 6 * _MIB
    # v5e/v6e-class (128 MiB physical VMEM). 4 MiB blocks -> 16 MiB footprint;
    # vmem_limit_bytes is raised explicitly below so this is safe on v5e too.
    return 4 * _MIB


def _hswish_jnp(x: jax.Array) -> jax.Array:
    return x * (jnp.clip(x + 3.0, 0.0, 6.0) * (1.0 / 6.0))


def hswish(x: jax.Array, *, min_pallas_elems: int = 64 * 1024) -> jax.Array:
    """Elementwise hard-swish: x * relu6(x + 3) / 6. Accepts any shape (e.g. NCHW)."""
    orig_shape = x.shape
    size = int(x.size)
    if size == 0:
        return x

    # Small-input fast path: pallas_call launch overhead dominates tiny activations.
    if size < min_pallas_elems:
        return _hswish_jnp(x)

    # Pick the widest lane count that divides the size so no padding pass is needed.
    lanes = next((l for l in _LANE_CHOICES if size % l == 0), None)
    if lanes is None:
        # Odd size (not a multiple of 128): fused XLA elementwise already has the
        # ideal 1-read + 1-write HBM traffic; padding here would add a full pass.
        return _hswish_jnp(x)

    itemsize = jnp.dtype(x.dtype).itemsize
    sublane = {4: 8, 2: 16, 1: 32}.get(itemsize, 8)

    rows = size // lanes
    block_bytes = _target_block_bytes()
    target_rows = max(sublane, _round_down(block_bytes // (lanes * itemsize), sublane))

    if rows <= sublane:
        # Single full-height block (block dim == full array dim, no (8,128) issue).
        row_block = rows
    else:
        # Sublane-aligned block, ragged last block is masked by Pallas.
        row_block = min(target_rows, _round_up(rows, sublane))
        # Guarantee >= 2 grid steps so ("parallel",) can shard rows across both
        # v7x TensorCores (and keeps the pipeline busy on all generations).
        half = max(sublane, _round_up(pl.cdiv(rows, 2), sublane))
        row_block = min(row_block, half)

    grid = (pl.cdiv(rows, row_block),)
    x2d = x.reshape(rows, lanes)   # contiguous reshape: free (no HBM pass)

    out2d = pl.pallas_call(
        _hswish_kernel,
        out_shape=jax.ShapeDtypeStruct((rows, lanes), x.dtype),
        grid_spec=pltpu.PrefetchScalarGridSpec(
            num_scalar_prefetch=0,
            grid=grid,
            in_specs=[pl.BlockSpec((row_block, lanes), lambda i: (i, 0))],
            out_specs=pl.BlockSpec((row_block, lanes), lambda i: (i, 0)),
        ),
        compiler_params=pltpu.CompilerParams(
            dimension_semantics=("parallel",),
            # 32 MiB: covers the largest (v7x, 6 MiB-block) footprint of ~24 MiB,
            # above v5e's 16 MiB scoped default, within every chip's physical VMEM.
            vmem_limit_bytes=32 * _MIB,
        ),
    )(x2d)

    return out2d.reshape(orig_shape)


def hswish_ref(x: jax.Array) -> jax.Array:
    return x * jnp.clip(x + 3.0, 0.0, 6.0) / 6.0


if __name__ == "__main__":
    key = jax.random.PRNGKey(0)
    k1, k2 = jax.random.split(key)

    # Small NCHW shape from the module spec (takes the fused-XLA fast path).
    x_small = jax.random.normal(k1, (2, 4, 16, 16), dtype=jnp.float32) * 4.0
    # Larger activation that exercises the Pallas kernel: 73728 elements ->
    # (72, 1024) slab, 2 grid steps, second step a ragged (masked) row-block.
    x_big = jax.random.normal(k2, (4, 18, 32, 32), dtype=jnp.float32) * 4.0

    out_small = jax.block_until_ready(hswish(x_small))
    out_big = jax.block_until_ready(hswish(x_big))

    for out, xin in ((out_small, x_small), (out_big, x_big)):
        ref = hswish_ref(xin)
        assert out.shape == xin.shape and out.dtype == xin.dtype
        assert jnp.allclose(out, ref, atol=1e-6, rtol=1e-5), "mismatch vs reference"

    print("KERNEL_OK")
</pallas_src>

<mosaic_0001>
module attributes {stable_mosaic.version = 11 : i64} {
  func.func @_hswish_kernel(%arg0: i32, %arg1: memref<40x1024xf32, #tpu.memory_space<vmem>>, %arg2: memref<40x1024xf32, #tpu.memory_space<vmem>>) attributes {dimension_semantics = [#tpu.dimension_semantics<parallel>], iteration_bounds = array<i64: 2>, scalar_prefetch = 0 : i64, scratch_operands = 0 : i64, tpu.core_type = #tpu.core_type<tc>, window_params = [{transform_indices = @transform_0, window_bounds = array<i64: 40, 1024>}, {transform_indices = @transform_1, window_bounds = array<i64: 40, 1024>}]} {
    %c0 = arith.constant 0 : index
    %c0_0 = arith.constant 0 : index
    %0 = vector.load %arg1[%c0, %c0_0] : memref<40x1024xf32, #tpu.memory_space<vmem>>, vector<40x1024xf32>
    %cst = arith.constant 3.000000e+00 : f32
    %1 = vector.broadcast %cst : f32 to vector<40x1024xf32>
    %2 = arith.addf %0, %1 : vector<40x1024xf32>
    %cst_1 = arith.constant 0.000000e+00 : f32
    %cst_2 = arith.constant 6.000000e+00 : f32
    %3 = vector.broadcast %cst_1 : f32 to vector<40x1024xf32>
    %4 = arith.maximumf %3, %2 : vector<40x1024xf32>
    %5 = vector.broadcast %cst_2 : f32 to vector<40x1024xf32>
    %6 = arith.minimumf %5, %4 : vector<40x1024xf32>
    %cst_3 = arith.constant 0.166666672 : f32
    %7 = vector.broadcast %cst_3 : f32 to vector<40x1024xf32>
    %8 = arith.mulf %6, %7 : vector<40x1024xf32>
    %9 = arith.mulf %0, %8 : vector<40x1024xf32>
    %c0_4 = arith.constant 0 : index
    %c0_5 = arith.constant 0 : index
    %10 = vector.load %arg2[%c0_4, %c0_5] : memref<40x1024xf32, #tpu.memory_space<vmem>>, vector<40x1024xf32>
    tpu.vector_store %arg2[%c0_4, %c0_5], %9 {strides = array<i32>} : memref<40x1024xf32, #tpu.memory_space<vmem>>, vector<40x1024xf32>,
    return
  }
  func.func @transform_0(%arg0: i32) -> (i32, i32) {
    %c0_i32 = arith.constant 0 : i32
    %c0_i32_0 = arith.constant 0 : i32
    return %arg0, %c0_i32 : i32, i32
  }
  func.func @transform_1(%arg0: i32) -> (i32, i32) {
    %c0_i32 = arith.constant 0 : i32
    %c0_i32_0 = arith.constant 0 : i32
    return %arg0, %c0_i32 : i32, i32
  }
}

</mosaic_0001>

<llo_original>
// kernel: tpu_custom_call.1
$region0: #{tpu_custom_call.1}
  #allocation0 [shape = 'u32[]', space=smem, size = 0x4, offset = 0x4, fixed_abs, tag = 'smem constant byte address 0x4 - core index']
  #allocation1 [shape = 'u32[144,128]{1,0:T(1,128)}', space=vmem, size = 0x12000, scoped, tag = 'internal scratch']
  %s0 = inlined_call_operand.hbm [shape: f32[72,1024], index: 0, kind: input, shape index: {}]
  %s1 = inlined_call_operand.hbm [shape: f32[72,1024], index: 1, kind: output, shape index: {}]
  %s2 = sld [smem:[#allocation0]]
  $region41: #{tpu_custom_call.1} parent=0
    _
  %s4 = ssub.s32 1, %s2
  %s5 = scalar_select 0, %s4, %s2
  $region1: #{tpu_custom_call.1} parent=0
    #allocation2 [shape = 'u8[327680]{0}', space=vmem, size = 0x50000, scoped, tag = 'input window, operand 0']
    #allocation3 [shape = 's32[2]{0}', space=sflag, size = 0x8, scoped, tag = 'scoped memory for tpu_custom_call.1']
    #allocation4 [shape = 's32[2]{0}', space=sflag, size = 0x8, scoped, tag = 'scoped memory for tpu_custom_call.1']
    #allocation5 [shape = 'u8[327680]{0}', space=vmem, size = 0x50000, scoped, tag = 'output window, operand 0']
    %6 = vsyncpa [#allocation3], 0
    %s7 = scalar_lea.sflag [#allocation3], 1
    %8 = vsyncpa %s7, 0
    %9 = vsyncpa [#allocation4], 0
    %s10 = scalar_lea.sflag [#allocation4], 1
    %11 = vsyncpa %s10, 0
    loop: start=0, step=1, limit=4
    $region2: #{tpu_custom_call.1} parent=1 // loop_pre_header
      _
    $region3: #{tpu_custom_call.1} parent=1 // loop_header
      %s13 = sphi 0, %s17
      %p14 = scmp.ge.s32.totalorder %s13, 4
      %s23 = sphi 0, %s25
      %s26 = sphi 0, %s23
      %s27 = sphi 0, %s26
      %s43 = sphi 0, %s27
      %s49 = sphi 0, %s51
      %s52 = sphi 0, %s49
      %s53 = sphi 0, %s52
      %s69 = sphi 0, %s53
    $region4: #{tpu_custom_call.1} parent=1 // loop_header_branch
      %16 = sbr.rel (%p14) target = $region8
    $region5: #{tpu_custom_call.1} parent=1 // loop_body
      %s18 = ssub.s32 %s13, 1
      %s19 = ssub.s32 %s13, 2
      %s20 = sadd.s32 %s13, 1
      %s21 = ssub.s32 %s13, %s20
      %p22 = scmp.eq.s32.totalorder %s21, 0
      %s24 = sadd.s32 %s23, 1
      %s25 = scalar_select %p22, %s23, %s24
      %p28 = pneg %p22
      %p29 = scmp.eq.s32.totalorder %s13, 1
      %p30 = por %p28, %p29
      %p31 = scmp.ne.s32.totalorder %s23, %s26
      %p32 = scmp.eq.s32.totalorder %s13, 0
      %p33 = por %p31, %p32
      %p34 = scmp.ne.s32.totalorder %s23, %s26
      %p35 = scmp.eq.s32.totalorder %s18, 1
      %p36 = por %p34, %p35
      %p37 = scmp.ne.s32.totalorder %s26, %s27
      %p38 = scmp.eq.s32.totalorder %s18, 0
      %p39 = por %p37, %p38
      %p40 = scmp.ne.s32.totalorder %s26, %s27
      %p41 = scmp.eq.s32.totalorder %s19, 1
      %p42 = por %p40, %p41
      %p44 = scmp.ne.s32.totalorder %s27, %s43
      %p45 = scmp.eq.s32.totalorder %s19, 0
      %p46 = por %p44, %p45
      %s47 = ssub.s32 %s13, %s20
      %p48 = scmp.eq.s32.totalorder %s47, 0
      %s50 = sadd.s32 %s49, 1
      %s51 = scalar_select %p48, %s49, %s50
      %p54 = pneg %p48
      %p55 = scmp.eq.s32.totalorder %s13, 1
      %p56 = por %p54, %p55
      %p57 = scmp.ne.s32.totalorder %s49, %s52
      %p58 = scmp.eq.s32.totalorder %s13, 0
      %p59 = por %p57, %p58
      %p60 = scmp.ne.s32.totalorder %s49, %s52
      %p61 = scmp.eq.s32.totalorder %s18, 1
      %p62 = por %p60, %p61
      %p63 = scmp.ne.s32.totalorder %s52, %s53
      %p64 = scmp.eq.s32.totalorder %s18, 0
      %p65 = por %p63, %p64
      %p66 = scmp.ne.s32.totalorder %s52, %s53
      %p67 = scmp.eq.s32.totalorder %s19, 1
      %p68 = por %p66, %p67
      %p70 = scmp.ne.s32.totalorder %s53, %s69
      %p71 = scmp.eq.s32.totalorder %s19, 0
      %p72 = por %p70, %p71
      %p73 = scmp.le.s32.totalorder 1, %s13
      %p74 = scmp.lt.s32.totalorder %s13, 3
      %p75 = pnand %p73, %p74
      %p76 = pneg %p75
      // Predicated region
      $region9: #{tpu_custom_call.1} parent=5 // pred_check
        _
      $region10: #{tpu_custom_call.1} parent=5 // pred_check_branch
        %78 = sbr.rel (%p75) target = $region12
      $region11: #{tpu_custom_call.1} parent=5 // pred_region
        %s79 = ssub.s32 %s13, 1
      $region12: #{tpu_custom_call.1} parent=5 // pred_fallthru
        _
      %p80 = scmp.lt.s32.totalorder %s13, 2
      // Predicated region
      $region13: #{tpu_custom_call.1} parent=5 // pred_check
        %p81 = pneg %p80
      $region14: #{tpu_custom_call.1} parent=5 // pred_check_branch
        %83 = sbr.rel (%p81) target = $region16
      $region15: #{tpu_custom_call.1} parent=5 // pred_region
        // Predicated region
        $region17: #{tpu_custom_call.1} parent=15 // pred_check
          %p84 = pneg %p33
        $region18: #{tpu_custom_call.1} parent=15 // pred_check_branch
          %86 = sbr.rel (%p84) target = $region20
        $region19: #{tpu_custom_call.1} parent=15 // pred_region
          %s87 = sand.u32 %s23, 1
          %s88 = scalar_lea.sflag [#allocation3], %s87
          %s89 = sand.u32 %s23, 1
          %s90 = smul.addr %s89, 320
          %s91 = scalar_lea.vmem [#allocation2], %s90
          %s92 = smul.u32 5, %s13
          %s93 = ssub.s32 9, %s92
          %p94 = scmp.lt.s32.totalorder %s93, 5
          %s95 = scalar_select %p94, %s93, 5
          %s96 = smul.u32 128, %s95
          %s97 = smul.u32 %s96, 8
          %s99 = ssub.s32 5120, %s97
          %100 = vsyncadd %s88, %s99
          %p101 = scmp.ne.s32.totalorder 0, %s97
          %s102 = smul.addr %s92, 8
          %s103 = smul.addr %s102, 128
          %s104 = scalar_lea.hbm %s0, %s103
          %s105 = smul.u32 64, %s95
          %s106 = sshll.u32 %s91, 4
          %s107 = int_to_ptr.vmem [resolvable:$true] %s106
          %s108 = sshll.u32 %s105, 4
          %112 = dma.hbm_to_vmem [thread:$0]  (%p101), %s104, %s108, %s107, %s88, 1024, 1024, 64
        $region20: #{tpu_custom_call.1} parent=15 // pred_fallthru
          _
      $region16: #{tpu_custom_call.1} parent=5 // pred_fallthru
        _
      %p113 = scmp.le.s32.totalorder 1, %s13
      %p114 = scmp.lt.s32.totalorder %s13, 3
      %p115 = pnand %p113, %p114
      %p116 = pneg %p115
      // Predicated region
      $region21: #{tpu_custom_call.1} parent=5 // pred_check
        _
      $region22: #{tpu_custom_call.1} parent=5 // pred_check_branch
        %118 = sbr.rel (%p115) target = $region24
      $region23: #{tpu_custom_call.1} parent=5 // pred_region
        %s119 = ssub.s32 %s13, 1
        %s120 = sand.u32 %s26, 1
        %s121 = scalar_lea.sflag [#allocation3], %s120
        %s122 = sand.u32 %s26, 1
        %s123 = smul.addr %s122, 320
        %s124 = scalar_lea.vmem [#allocation2], %s123
        // Predicated region
        $region25: #{tpu_custom_call.1} parent=23 // pred_check
          %p125 = pneg %p39
        $region26: #{tpu_custom_call.1} parent=23 // pred_check_branch
          %127 = sbr.rel (%p125) target = $region28
        $region27: #{tpu_custom_call.1} parent=23 // pred_region
          %128 = dma.done %s121, 5120
        $region28: #{tpu_custom_call.1} parent=23 // pred_fallthru
          _
        %s129 = sand.u32 %s26, 1
        %s130 = scalar_lea.sflag [#allocation3], %s129
        %s131 = sand.u32 %s26, 1
        %s132 = smul.addr %s131, 320
        %s133 = scalar_lea.vmem [#allocation2], %s132
        %p134 = pneg %p39
        %p135 = pneg %p36
        %p136 = pneg %p65
        %p137 = pneg %p62
        %s138 = sand.u32 %s52, 1
        %s139 = scalar_lea.sflag [#allocation4], %s138
        %s140 = sand.u32 %s52, 1
        %s141 = smul.addr %s140, 320
        %s142 = scalar_lea.vmem [#allocation5], %s141
        %s143 = smul.u32 5, %s18
        %s144 = ssub.s32 9, %s143
        %p145 = scmp.lt.s32.totalorder %s144, 5
        %s146 = scalar_select %p145, %s144, 5
        %s147 = smul.u32 128, %s146
        %s148 = smul.u32 %s147, 8
        %s149 = smul.u32 5, %s18
        %s150 = ssub.s32 9, %s149
        %p151 = scmp.lt.s32.totalorder %s150, 5
        %s152 = scalar_select %p151, %s150, 5
        %s153 = smul.u32 128, %s152
        %s154 = smul.u32 %s153, 8
        %v155 = vld [vmem:[%s124] sm:$0xff]
        %v156 = vld [vmem:[%s124 + $0x8] sm:$0xff]
        %v157 = vld [vmem:[%s124 + $0x10] sm:$0xff]
        %v158 = vld [vmem:[%s124 + $0x18] sm:$0xff]
        %v159 = vld [vmem:[%s124 + $0x20] sm:$0xff]
        %v160 = vld [vmem:[%s124 + $0x28] sm:$0xff]
        %v161 = vld [vmem:[%s124 + $0x30] sm:$0xff]
        %v162 = vld [vmem:[%s124 + $0x38] sm:$0xff]
        %v163 = vld [vmem:[%s124 + $0x40] sm:$0xff]
        %v164 = vld [vmem:[%s124 + $0x48] sm:$0xff]
        %v165 = vld [vmem:[%s124 + $0x50] sm:$0xff]
        %v166 = vld [vmem:[%s124 + $0x58] sm:$0xff]
        %v167 = vld [vmem:[%s124 + $0x60] sm:$0xff]
        %v168 = vld [vmem:[%s124 + $0x68] sm:$0xff]
        %v169 = vld [vmem:[%s124 + $0x70] sm:$0xff]
        %v170 = vld [vmem:[%s124 + $0x78] sm:$0xff]
        %v171 = vld [vmem:[%s124 + $0x80] sm:$0xff]
        %v172 = vld [vmem:[%s124 + $0x88] sm:$0xff]
        %v173 = vld [vmem:[%s124 + $0x90] sm:$0xff]
        %v174 = vld [vmem:[%s124 + $0x98] sm:$0xff]
        %v175 = vld [vmem:[%s124 + $0xa0] sm:$0xff]
        %v176 = vld [vmem:[%s124 + $0xa8] sm:$0xff]
        %v177 = vld [vmem:[%s124 + $0xb0] sm:$0xff]
        %v178 = vld [vmem:[%s124 + $0xb8] sm:$0xff]
        %v179 = vld [vmem:[%s124 + $0xc0] sm:$0xff]
        %v180 = vld [vmem:[%s124 + $0xc8] sm:$0xff]
        %v181 = vld [vmem:[%s124 + $0xd0] sm:$0xff]
        %v182 = vld [vmem:[%s124 + $0xd8] sm:$0xff]
        %v183 = vld [vmem:[%s124 + $0xe0] sm:$0xff]
        %v184 = vld [vmem:[%s124 + $0xe8] sm:$0xff]
        %v185 = vld [vmem:[%s124 + $0xf0] sm:$0xff]
        %v186 = vld [vmem:[%s124 + $0xf8] sm:$0xff]
        %v187 = vld [vmem:[%s124 + $0x100] sm:$0xff]
        %v188 = vld [vmem:[%s124 + $0x108] sm:$0xff]
        %v189 = vld [vmem:[%s124 + $0x110] sm:$0xff]
        %v190 = vld [vmem:[%s124 + $0x118] sm:$0xff]
        %v191 = vld [vmem:[%s124 + $0x120] sm:$0xff]
        %v192 = vld [vmem:[%s124 + $0x128] sm:$0xff]
        %v193 = vld [vmem:[%s124 + $0x130] sm:$0xff]
        %v194 = vld [vmem:[%s124 + $0x138] sm:$0xff]
        %v195 = vadd.f32 %v155, 3.0
        %v196 = vadd.f32 %v156, 3.0
        %v197 = vadd.f32 %v157, 3.0
        %v198 = vadd.f32 %v158, 3.0
        %v199 = vadd.f32 %v159, 3.0
        %v200 = vadd.f32 %v160, 3.0
        %v201 = vadd.f32 %v161, 3.0
        %v202 = vadd.f32 %v162, 3.0
        %v203 = vadd.f32 %v163, 3.0
        %v204 = vadd.f32 %v164, 3.0
        %v205 = vadd.f32 %v165, 3.0
        %v206 = vadd.f32 %v166, 3.0
        %v207 = vadd.f32 %v167, 3.0
        %v208 = vadd.f32 %v168, 3.0
        %v209 = vadd.f32 %v169, 3.0
        %v210 = vadd.f32 %v170, 3.0
        %v211 = vadd.f32 %v171, 3.0
        %v212 = vadd.f32 %v172, 3.0
        %v213 = vadd.f32 %v173, 3.0
        %v214 = vadd.f32 %v174, 3.0
        %v215 = vadd.f32 %v175, 3.0
        %v216 = vadd.f32 %v176, 3.0
        %v217 = vadd.f32 %v177, 3.0
        %v218 = vadd.f32 %v178, 3.0
        %v219 = vadd.f32 %v179, 3.0
        %v220 = vadd.f32 %v180, 3.0
        %v221 = vadd.f32 %v181, 3.0
        %v222 = vadd.f32 %v182, 3.0
        %v223 = vadd.f32 %v183, 3.0
        %v224 = vadd.f32 %v184, 3.0
        %v225 = vadd.f32 %v185, 3.0
        %v226 = vadd.f32 %v186, 3.0
        %v227 = vadd.f32 %v187, 3.0
        %v228 = vadd.f32 %v188, 3.0
        %v229 = vadd.f32 %v189, 3.0
        %v230 = vadd.f32 %v190, 3.0
        %v231 = vadd.f32 %v191, 3.0
        %v232 = vadd.f32 %v192, 3.0
        %v233 = vadd.f32 %v193, 3.0
        %v234 = vadd.f32 %v194, 3.0
        %v235 = vmax.f32 %v195, 0.0
        %v236 = vmax.f32 %v196, 0.0
        %v237 = vmax.f32 %v197, 0.0
        %v238 = vmax.f32 %v198, 0.0
        %v239 = vmax.f32 %v199, 0.0
        %v240 = vmax.f32 %v200, 0.0
        %v241 = vmax.f32 %v201, 0.0
        %v242 = vmax.f32 %v202, 0.0
        %v243 = vmax.f32 %v203, 0.0
        %v244 = vmax.f32 %v204, 0.0
        %v245 = vmax.f32 %v205, 0.0
        %v246 = vmax.f32 %v206, 0.0
        %v247 = vmax.f32 %v207, 0.0
        %v248 = vmax.f32 %v208, 0.0
        %v249 = vmax.f32 %v209, 0.0
        %v250 = vmax.f32 %v210, 0.0
        %v251 = vmax.f32 %v211, 0.0
        %v252 = vmax.f32 %v212, 0.0
        %v253 = vmax.f32 %v213, 0.0
        %v254 = vmax.f32 %v214, 0.0
        %v255 = vmax.f32 %v215, 0.0
        %v256 = vmax.f32 %v216, 0.0
        %v257 = vmax.f32 %v217, 0.0
        %v258 = vmax.f32 %v218, 0.0
        %v259 = vmax.f32 %v219, 0.0
        %v260 = vmax.f32 %v220, 0.0
        %v261 = vmax.f32 %v221, 0.0
        %v262 = vmax.f32 %v222, 0.0
        %v263 = vmax.f32 %v223, 0.0
        %v264 = vmax.f32 %v224, 0.0
        %v265 = vmax.f32 %v225, 0.0
        %v266 = vmax.f32 %v226, 0.0
        %v267 = vmax.f32 %v227, 0.0
        %v268 = vmax.f32 %v228, 0.0
        %v269 = vmax.f32 %v229, 0.0
        %v270 = vmax.f32 %v230, 0.0
        %v271 = vmax.f32 %v231, 0.0
        %v272 = vmax.f32 %v232, 0.0
        %v273 = vmax.f32 %v233, 0.0
        %v274 = vmax.f32 %v234, 0.0
        %v275 = vmin.f32 %v235, 6.0
        %v276 = vmin.f32 %v236, 6.0
        %v277 = vmin.f32 %v237, 6.0
        %v278 = vmin.f32 %v238, 6.0
        %v279 = vmin.f32 %v239, 6.0
        %v280 = vmin.f32 %v240, 6.0
        %v281 = vmin.f32 %v241, 6.0
        %v282 = vmin.f32 %v242, 6.0
        %v283 = vmin.f32 %v243, 6.0
        %v284 = vmin.f32 %v244, 6.0
        %v285 = vmin.f32 %v245, 6.0
        %v286 = vmin.f32 %v246, 6.0
        %v287 = vmin.f32 %v247, 6.0
        %v288 = vmin.f32 %v248, 6.0
        %v289 = vmin.f32 %v249, 6.0
        %v290 = vmin.f32 %v250, 6.0
        %v291 = vmin.f32 %v251, 6.0
        %v292 = vmin.f32 %v252, 6.0
        %v293 = vmin.f32 %v253, 6.0
        %v294 = vmin.f32 %v254, 6.0
        %v295 = vmin.f32 %v255, 6.0
        %v296 = vmin.f32 %v256, 6.0
        %v297 = vmin.f32 %v257, 6.0
        %v298 = vmin.f32 %v258, 6.0
        %v299 = vmin.f32 %v259, 6.0
        %v300 = vmin.f32 %v260, 6.0
        %v301 = vmin.f32 %v261, 6.0
        %v302 = vmin.f32 %v262, 6.0
        %v303 = vmin.f32 %v263, 6.0
        %v304 = vmin.f32 %v264, 6.0
        %v305 = vmin.f32 %v265, 6.0
        %v306 = vmin.f32 %v266, 6.0
        %v307 = vmin.f32 %v267, 6.0
        %v308 = vmin.f32 %v268, 6.0
        %v309 = vmin.f32 %v269, 6.0
        %v310 = vmin.f32 %v270, 6.0
        %v311 = vmin.f32 %v271, 6.0
        %v312 = vmin.f32 %v272, 6.0
        %v313 = vmin.f32 %v273, 6.0
        %v314 = vmin.f32 %v274, 6.0
        %v315 = vmul.f32 %v275, 0.16666667
        %v316 = vmul.f32 %v276, 0.16666667
        %v317 = vmul.f32 %v277, 0.16666667
        %v318 = vmul.f32 %v278, 0.16666667
        %v319 = vmul.f32 %v279, 0.16666667
        %v320 = vmul.f32 %v280, 0.16666667
        %v321 = vmul.f32 %v281, 0.16666667
        %v322 = vmul.f32 %v282, 0.16666667
        %v323 = vmul.f32 %v283, 0.16666667
        %v324 = vmul.f32 %v284, 0.16666667
        %v325 = vmul.f32 %v285, 0.16666667
        %v326 = vmul.f32 %v286, 0.16666667
        %v327 = vmul.f32 %v287, 0.16666667
        %v328 = vmul.f32 %v288, 0.16666667
        %v329 = vmul.f32 %v289, 0.16666667
        %v330 = vmul.f32 %v290, 0.16666667
        %v331 = vmul.f32 %v291, 0.16666667
        %v332 = vmul.f32 %v292, 0.16666667
        %v333 = vmul.f32 %v293, 0.16666667
        %v334 = vmul.f32 %v294, 0.16666667
        %v335 = vmul.f32 %v295, 0.16666667
        %v336 = vmul.f32 %v296, 0.16666667
        %v337 = vmul.f32 %v297, 0.16666667
        %v338 = vmul.f32 %v298, 0.16666667
        %v339 = vmul.f32 %v299, 0.16666667
        %v340 = vmul.f32 %v300, 0.16666667
        %v341 = vmul.f32 %v301, 0.16666667
        %v342 = vmul.f32 %v302, 0.16666667
        %v343 = vmul.f32 %v303, 0.16666667
        %v344 = vmul.f32 %v304, 0.16666667
        %v345 = vmul.f32 %v305, 0.16666667
        %v346 = vmul.f32 %v306, 0.16666667
        %v347 = vmul.f32 %v307, 0.16666667
        %v348 = vmul.f32 %v308, 0.16666667
        %v349 = vmul.f32 %v309, 0.16666667
        %v350 = vmul.f32 %v310, 0.16666667
        %v351 = vmul.f32 %v311, 0.16666667
        %v352 = vmul.f32 %v312, 0.16666667
        %v353 = vmul.f32 %v313, 0.16666667
        %v354 = vmul.f32 %v314, 0.16666667
        %v355 = vmul.f32 %v155, %v315
        %v356 = vmul.f32 %v156, %v316
        %v357 = vmul.f32 %v157, %v317
        %v358 = vmul.f32 %v158, %v318
        %v359 = vmul.f32 %v159, %v319
        %v360 = vmul.f32 %v160, %v320
        %v361 = vmul.f32 %v161, %v321
        %v362 = vmul.f32 %v162, %v322
        %v363 = vmul.f32 %v163, %v323
        %v364 = vmul.f32 %v164, %v324
        %v365 = vmul.f32 %v165, %v325
        %v366 = vmul.f32 %v166, %v326
        %v367 = vmul.f32 %v167, %v327
        %v368 = vmul.f32 %v168, %v328
        %v369 = vmul.f32 %v169, %v329
        %v370 = vmul.f32 %v170, %v330
        %v371 = vmul.f32 %v171, %v331
        %v372 = vmul.f32 %v172, %v332
        %v373 = vmul.f32 %v173, %v333
        %v374 = vmul.f32 %v174, %v334
        %v375 = vmul.f32 %v175, %v335
        %v376 = vmul.f32 %v176, %v336
        %v377 = vmul.f32 %v177, %v337
        %v378 = vmul.f32 %v178, %v338
        %v379 = vmul.f32 %v179, %v339
        %v380 = vmul.f32 %v180, %v340
        %v381 = vmul.f32 %v181, %v341
        %v382 = vmul.f32 %v182, %v342
        %v383 = vmul.f32 %v183, %v343
        %v384 = vmul.f32 %v184, %v344
        %v385 = vmul.f32 %v185, %v345
        %v386 = vmul.f32 %v186, %v346
        %v387 = vmul.f32 %v187, %v347
        %v388 = vmul.f32 %v188, %v348
        %v389 = vmul.f32 %v189, %v349
        %v390 = vmul.f32 %v190, %v350
        %v391 = vmul.f32 %v191, %v351
        %v392 = vmul.f32 %v192, %v352
        %v393 = vmul.f32 %v193, %v353
        %v394 = vmul.f32 %v194, %v354
        %395 = vst [vmem:[%s142] sm:$0xff] %v355
        %396 = vst [vmem:[%s142 + $0x8] sm:$0xff] %v356
        %397 = vst [vmem:[%s142 + $0x10] sm:$0xff] %v357
        %398 = vst [vmem:[%s142 + $0x18] sm:$0xff] %v358
        %399 = vst [vmem:[%s142 + $0x20] sm:$0xff] %v359
        %400 = vst [vmem:[%s142 + $0x28] sm:$0xff] %v360
        %401 = vst [vmem:[%s142 + $0x30] sm:$0xff] %v361
        %402 = vst [vmem:[%s142 + $0x38] sm:$0xff] %v362
        %403 = vst [vmem:[%s142 + $0x40] sm:$0xff] %v363
        %404 = vst [vmem:[%s142 + $0x48] sm:$0xff] %v364
        %405 = vst [vmem:[%s142 + $0x50] sm:$0xff] %v365
        %406 = vst [vmem:[%s142 + $0x58] sm:$0xff] %v366
        %407 = vst [vmem:[%s142 + $0x60] sm:$0xff] %v367
        %408 = vst [vmem:[%s142 + $0x68] sm:$0xff] %v368
        %409 = vst [vmem:[%s142 + $0x70] sm:$0xff] %v369
        %410 = vst [vmem:[%s142 + $0x78] sm:$0xff] %v370
        %411 = vst [vmem:[%s142 + $0x80] sm:$0xff] %v371
        %412 = vst [vmem:[%s142 + $0x88] sm:$0xff] %v372
        %413 = vst [vmem:[%s142 + $0x90] sm:$0xff] %v373
        %414 = vst [vmem:[%s142 + $0x98] sm:$0xff] %v374
        %415 = vst [vmem:[%s142 + $0xa0] sm:$0xff] %v375
        %416 = vst [vmem:[%s142 + $0xa8] sm:$0xff] %v376
        %417 = vst [vmem:[%s142 + $0xb0] sm:$0xff] %v377
        %418 = vst [vmem:[%s142 + $0xb8] sm:$0xff] %v378
        %419 = vst [vmem:[%s142 + $0xc0] sm:$0xff] %v379
        %420 = vst [vmem:[%s142 + $0xc8] sm:$0xff] %v380
        %421 = vst [vmem:[%s142 + $0xd0] sm:$0xff] %v381
        %422 = vst [vmem:[%s142 + $0xd8] sm:$0xff] %v382
        %423 = vst [vmem:[%s142 + $0xe0] sm:$0xff] %v383
        %424 = vst [vmem:[%s142 + $0xe8] sm:$0xff] %v384
        %425 = vst [vmem:[%s142 + $0xf0] sm:$0xff] %v385
        %426 = vst [vmem:[%s142 + $0xf8] sm:$0xff] %v386
        %427 = vst [vmem:[%s142 + $0x100] sm:$0xff] %v387
        %428 = vst [vmem:[%s142 + $0x108] sm:$0xff] %v388
        %429 = vst [vmem:[%s142 + $0x110] sm:$0xff] %v389
        %430 = vst [vmem:[%s142 + $0x118] sm:$0xff] %v390
        %431 = vst [vmem:[%s142 + $0x120] sm:$0xff] %v391
        %432 = vst [vmem:[%s142 + $0x128] sm:$0xff] %v392
        %433 = vst [vmem:[%s142 + $0x130] sm:$0xff] %v393
        %434 = vst [vmem:[%s142 + $0x138] sm:$0xff] %v394
        %s435 = sand.u32 %s52, 1
        %s436 = scalar_lea.sflag [#allocation4], %s435
        %s437 = sand.u32 %s52, 1
        %s438 = smul.addr %s437, 320
        %s439 = scalar_lea.vmem [#allocation5], %s438
        // Predicated region
        $region29: #{tpu_custom_call.1} parent=23 // pred_check
          %p440 = pneg %p62
        $region30: #{tpu_custom_call.1} parent=23 // pred_check_branch
          %442 = sbr.rel (%p440) target = $region32
        $region31: #{tpu_custom_call.1} parent=23 // pred_region
          %s443 = smul.u32 5, %s18
          %s444 = ssub.s32 9, %s443
          %p445 = scmp.lt.s32.totalorder %s444, 5
          %s446 = scalar_select %p445, %s444, 5
          %s447 = smul.u32 128, %s446
          %s448 = smul.u32 %s447, 8
          %s450 = ssub.s32 5120, %s448
          %451 = vsyncadd %s436, %s450
          %p452 = scmp.ne.s32.totalorder 0, %s448
          %s453 = smul.addr %s443, 8
          %s454 = smul.addr %s453, 128
          %s455 = scalar_lea.hbm %s1, %s454
          %s456 = smul.u32 64, %s446
          %s457 = sshll.u32 %s439, 4
          %s458 = int_to_ptr.vmem [resolvable:$true] %s457
          %s459 = sshll.u32 %s456, 4
          %463 = dma.vmem_to_hbm [thread:$0]  (%p452), %s458, %s459, %s455, %s436, 1024, 1024, 64
        $region32: #{tpu_custom_call.1} parent=23 // pred_fallthru
          _
      $region24: #{tpu_custom_call.1} parent=5 // pred_fallthru
        _
      %p464 = scmp.le.s32.totalorder 2, %s13
      // Predicated region
      $region33: #{tpu_custom_call.1} parent=5 // pred_check
        %p465 = pneg %p464
      $region34: #{tpu_custom_call.1} parent=5 // pred_check_branch
        %467 = sbr.rel (%p465) target = $region36
      $region35: #{tpu_custom_call.1} parent=5 // pred_region
        %s468 = ssub.s32 %s13, 2
        // Predicated region
        $region37: #{tpu_custom_call.1} parent=35 // pred_check
          %p469 = pneg %p68
        $region38: #{tpu_custom_call.1} parent=35 // pred_check_branch
          %471 = sbr.rel (%p469) target = $region40
        $region39: #{tpu_custom_call.1} parent=35 // pred_region
          %s472 = sand.u32 %s53, 1
          %s473 = scalar_lea.sflag [#allocation4], %s472
          %s474 = sand.u32 %s53, 1
          %s475 = smul.addr %s474, 320
          %s476 = scalar_lea.vmem [#allocation5], %s475
          %477 = dma.done %s473, 5120
        $region40: #{tpu_custom_call.1} parent=35 // pred_fallthru
          _
      $region36: #{tpu_custom_call.1} parent=5 // pred_fallthru
        _
    $region6: #{tpu_custom_call.1} parent=1 // loop_footer
      %s17 = sadd.s32 1, %s13
    $region7: #{tpu_custom_call.1} parent=1 // loop_footer_branch
      %12 = sbr.rel target = $region3
    $region8: #{tpu_custom_call.1} parent=1 // loop_exit
      _
    %478 = vsyncpa [#allocation3], 1
    %s479 = scalar_lea.sflag [#allocation3], 1
    %480 = vsyncpa %s479, 1
    %481 = vsyncpa [#allocation4], 1
    %s482 = scalar_lea.sflag [#allocation4], 1
    %483 = vsyncpa %s482, 1

</llo_original>
